<compile_context>
chip_gen: v7x
topology: tpu7x:2x2x1
jax: 0.10.0
libtpu: 0.0.40
codegen_flags: <defaults>
</compile_context>

<pallas_src>
import jax
import jax.numpy as jnp
from jax.experimental import pallas as pl
from jax.experimental.pallas import tpu as pltpu


def _dequant_kernel(scale_ref, x_ref, o_ref):
    # scale_ref: scalar-prefetch SMEM ref of shape (1,); x_ref/o_ref: VMEM tiles.
    s = scale_ref[0]
    # Widen on the VPU, multiply in f32, cast at the store (no-op for f32 out).
    o_ref[...] = (x_ref[...].astype(jnp.float32) * s).astype(o_ref.dtype)


def _round_up(v: int, m: int) -> int:
    return ((v + m - 1) // m) * m


def dequant(x: jax.Array, scale, out_dtype=None) -> jax.Array:
    """Elementwise dequantize: x * scale (scale is a per-tensor scalar)."""
    orig_shape = x.shape
    total = x.size

    # Output dtype: f32 by default (matches torch promotion for int8/bf16/f32
    # inputs); clamp away f64 which TPU Pallas does not support well.
    if out_dtype is None:
        out_dtype = jnp.float32
    out_dtype = jnp.dtype(out_dtype)
    if out_dtype == jnp.dtype("float64"):
        out_dtype = jnp.dtype(jnp.float32)

    # --- lane-dense 2D view -------------------------------------------------
    # Widest last dim that evenly divides the tensor (full unmasked vst);
    # otherwise pad the flattened array to a multiple of 1024 and slice back.
    width = None
    for w in (1024, 512, 256, 128):
        if total % w == 0:
            width = w
            break
    flat = x.reshape(-1)
    padded_total = total
    if width is None:
        width = 1024
        padded_total = _round_up(total, width)
        flat = jnp.pad(flat, (0, padded_total - total))
    rows = padded_total // width
    x2d = flat.reshape(rows, width)

    # --- block sizing ---------------------------------------------------------
    in_itemsize = jnp.dtype(x.dtype).itemsize
    out_itemsize = out_dtype.itemsize
    # Native sublane packing of the (narrower) input dtype: 32/16/8 rows for
    # 1/2/4-byte elements.  Always a multiple of 8, so it also satisfies the
    # output layout.
    sublane = max(8, 32 // max(1, min(4, in_itemsize)))

    # ~6 MiB per buffer (sized against the wider of in/out dtypes).  With
    # in+out double-buffering that's ~24 MiB of VMEM; vmem_limit_bytes below
    # covers v5e's 16 MiB scoped default and stays under v7x's 64 MiB physical.
    itemsize = max(in_itemsize, out_itemsize)
    max_block_bytes = 6 * 1024 * 1024
    max_block_rows = max(sublane,
                         (max_block_bytes // (width * itemsize)) // sublane * sublane)

    # Minimum grid steps: keep >=2 (>=4 for multi-MiB tensors) so v7x's two
    # TensorCores both stream and DMA overlaps compute; tiny tensors stay at 1.
    in_bytes = total * in_itemsize
    if in_bytes >= 4 * 1024 * 1024:
        min_steps = 4
    elif in_bytes >= 256 * 1024:
        min_steps = 2
    else:
        min_steps = 1

    target_rows = min(-(-rows // min_steps), max_block_rows)
    if target_rows >= rows:
        block_rows = rows                       # single step; full-dim block is legal
    else:
        block_rows = min(max_block_rows, _round_up(target_rows, sublane))
        if block_rows >= rows:
            block_rows = rows

    grid = (pl.cdiv(rows, block_rows),)
    scale_arr = jnp.asarray(scale, jnp.float32).reshape(1)

    out2d = pl.pallas_call(
        _dequant_kernel,
        out_shape=jax.ShapeDtypeStruct((rows, width), out_dtype),
        grid_spec=pltpu.PrefetchScalarGridSpec(
            num_scalar_prefetch=1,   # scale_arr lands in SMEM before the grid runs
            grid=grid,
            in_specs=[pl.BlockSpec((block_rows, width), lambda i, s_ref: (i, 0))],
            out_specs=pl.BlockSpec((block_rows, width), lambda i, s_ref: (i, 0)),
        ),
        compiler_params=pltpu.CompilerParams(
            dimension_semantics=("parallel",),   # shard grid across TCs (v7x megacore)
            vmem_limit_bytes=48 * 1024 * 1024,   # 4 x ~6 MiB buffers + headroom;
                                                 # under v7x's 64 MiB physical VMEM
        ),
    )(scale_arr, x2d)

    out_flat = out2d.reshape(-1)
    if padded_total != total:
        out_flat = out_flat[:total]
    return out_flat.reshape(orig_shape)


if __name__ == "__main__":
    key = jax.random.PRNGKey(0)
    kx, ks = jax.random.split(key)

    # Small NCHW input consistent with a quantized activation tensor.
    x = jax.random.normal(kx, (2, 4, 16, 16), dtype=jnp.float32)
    scale = jax.random.uniform(ks, (), dtype=jnp.float32) + 0.5  # per-tensor scale

    out = dequant(x, scale)
    out = jax.block_until_ready(out)

    # Reference check against plain JAX broadcast multiply.
    ref = x * scale
    assert out.shape == x.shape
    assert out.dtype == ref.dtype
    assert jnp.allclose(out, ref, rtol=1e-6, atol=1e-6)

    # Exercise the padded-fallback path (total not divisible by 128) at small size.
    x_odd = jax.random.normal(kx, (3, 5, 7), dtype=jnp.float32)
    out_odd = jax.block_until_ready(dequant(x_odd, scale))
    assert jnp.allclose(out_odd, x_odd * scale, rtol=1e-6, atol=1e-6)

    print("KERNEL_OK")
</pallas_src>

<mosaic_0001>
module attributes {stable_mosaic.version = 11 : i64} {
  func.func @_dequant_kernel(%arg0: i32, %arg1: memref<1xf32, #tpu.memory_space<smem>>, %arg2: memref<2x1024xf32, #tpu.memory_space<vmem>>, %arg3: memref<2x1024xf32, #tpu.memory_space<vmem>>) attributes {dimension_semantics = [#tpu.dimension_semantics<parallel>], iteration_bounds = array<i64: 1>, scalar_prefetch = 1 : i64, scratch_operands = 0 : i64, tpu.core_type = #tpu.core_type<tc>, window_params = [{transform_indices = @transform_0, window_bounds = array<i64: 2, 1024>}, {transform_indices = @transform_1, window_bounds = array<i64: 2, 1024>}]} {
    %c0 = arith.constant 0 : index
    %0 = memref.load %arg1[%c0] : memref<1xf32, #tpu.memory_space<smem>>
    %c0_0 = arith.constant 0 : index
    %c0_1 = arith.constant 0 : index
    %1 = vector.load %arg2[%c0_0, %c0_1] : memref<2x1024xf32, #tpu.memory_space<vmem>>, vector<2x1024xf32>
    %2 = vector.broadcast %0 : f32 to vector<2x1024xf32>
    %3 = arith.mulf %1, %2 : vector<2x1024xf32>
    %c0_2 = arith.constant 0 : index
    %c0_3 = arith.constant 0 : index
    %4 = vector.load %arg3[%c0_2, %c0_3] : memref<2x1024xf32, #tpu.memory_space<vmem>>, vector<2x1024xf32>
    tpu.vector_store %arg3[%c0_2, %c0_3], %3 {strides = array<i32>} : memref<2x1024xf32, #tpu.memory_space<vmem>>, vector<2x1024xf32>,
    return
  }
  func.func @transform_0(%arg0: i32, %arg1: memref<1xf32, #tpu.memory_space<smem>>) -> (i32, i32) {
    %c0_i32 = arith.constant 0 : i32
    %c0_i32_0 = arith.constant 0 : i32
    return %arg0, %c0_i32 : i32, i32
  }
  func.func @transform_1(%arg0: i32, %arg1: memref<1xf32, #tpu.memory_space<smem>>) -> (i32, i32) {
    %c0_i32 = arith.constant 0 : i32
    %c0_i32_0 = arith.constant 0 : i32
    return %arg0, %c0_i32 : i32, i32
  }
}

</mosaic_0001>

<llo_original>
// kernel: tpu_custom_call.1
$region0: #{tpu_custom_call.1}
  #allocation0 [shape = 'u32[]', space=smem, size = 0x4, offset = 0x4, fixed_abs, tag = 'smem constant byte address 0x4 - core index']
  #allocation1 [shape = 'u32[144,128]{1,0:T(1,128)}', space=vmem, size = 0x12000, scoped, tag = 'internal scratch']
  #allocation2 [shape = 's32[1]{0}', space=sflag, size = 0x4, scoped, tag = 'scoped memory for tpu_custom_call.1']
  #allocation3 [shape = 'f32[1]{0:T(128)S(6)}', space=smem, size = 0x200, scoped, tag = 'prefetched SMEM operand 0']
  %s0 = inlined_call_operand.<no memory space> [shape: f32[1], index: 0, kind: input, shape index: {}]
  %s1 = inlined_call_operand.hbm [shape: f32[2,1024], index: 1, kind: input, shape index: {}]
  %s2 = inlined_call_operand.hbm [shape: f32[2,1024], index: 2, kind: output, shape index: {}]
  %s3 = sld [smem:[#allocation0]]
  $region18: #{tpu_custom_call.1} parent=0
    _
  %s5 = ssub.s32 1, %s3
  %s6 = scalar_select 0, %s5, %s3
  %7 = sst [smem:[#allocation3]] %s0
  $region1: #{tpu_custom_call.1} parent=0
    #allocation4 [shape = 'u8[8192]{0}', space=vmem, size = 0x2000, scoped, tag = 'input window, operand 1, single buffered']
    #allocation5 [shape = 's32[1]{0}', space=sflag, size = 0x4, scoped, tag = 'scoped memory for tpu_custom_call.1']
    #allocation6 [shape = 's32[1]{0}', space=sflag, size = 0x4, scoped, tag = 'scoped memory for tpu_custom_call.1']
    #allocation7 [shape = 'u8[8192]{0}', space=vmem, size = 0x2000, scoped, tag = 'output window, operand 0, single buffered']
    %8 = vsyncpa [#allocation5], 0
    %9 = vsyncpa [#allocation6], 0
    // Predicated region
    $region2: #{tpu_custom_call.1} parent=1 // pred_check
      _
    $region3: #{tpu_custom_call.1} parent=1 // pred_check_branch
      %11 = sbr.rel (0) target = $region5
    $region4: #{tpu_custom_call.1} parent=1 // pred_region
      %s13 = ssub.s32 256, 256
      %14 = vsyncadd [#allocation5], %s13
      %s16 = sshll.u32 [#allocation4], 4
      %s17 = int_to_ptr.vmem [resolvable:$true] %s16
      %19 = dma.hbm_to_vmem [thread:$0]  %s1, 256, %s17, [#allocation5]
    $region5: #{tpu_custom_call.1} parent=1 // pred_fallthru
      _
    // Predicated region
    $region6: #{tpu_custom_call.1} parent=1 // pred_check
      _
    $region7: #{tpu_custom_call.1} parent=1 // pred_check_branch
      %21 = sbr.rel (0) target = $region9
    $region8: #{tpu_custom_call.1} parent=1 // pred_region
      %22 = dma.done [#allocation5], 256
    $region9: #{tpu_custom_call.1} parent=1 // pred_fallthru
      _
    %s23 = sld [smem:[#allocation3]]
    %v24 = vld [vmem:[#allocation4] sm:$0xff]
    %v25 = vld [vmem:[#allocation4 + $0x8] sm:$0xff]
    %v26 = vstv %s23
    %v27 = vmul.f32 %v24, %v26
    %v28 = vmul.f32 %v25, %v26
    %29 = vst [vmem:[#allocation7] sm:$0xff] %v27
    %30 = vst [vmem:[#allocation7 + $0x8] sm:$0xff] %v28
    // Predicated region
    $region10: #{tpu_custom_call.1} parent=1 // pred_check
      _
    $region11: #{tpu_custom_call.1} parent=1 // pred_check_branch
      %32 = sbr.rel (0) target = $region13
    $region12: #{tpu_custom_call.1} parent=1 // pred_region
      %s34 = ssub.s32 256, 256
      %35 = vsyncadd [#allocation6], %s34
      %s37 = sshll.u32 [#allocation7], 4
      %s38 = int_to_ptr.vmem [resolvable:$true] %s37
      %40 = dma.vmem_to_hbm [thread:$0]  %s38, 256, %s2, [#allocation6]
    $region13: #{tpu_custom_call.1} parent=1 // pred_fallthru
      _
    // Predicated region
    $region14: #{tpu_custom_call.1} parent=1 // pred_check
      _
    $region15: #{tpu_custom_call.1} parent=1 // pred_check_branch
      %42 = sbr.rel (0) target = $region17
    $region16: #{tpu_custom_call.1} parent=1 // pred_region
      %43 = dma.done [#allocation6], 256
    $region17: #{tpu_custom_call.1} parent=1 // pred_fallthru
      _
    %44 = vsyncpa [#allocation5], 1
    %45 = vsyncpa [#allocation6], 1

</llo_original>
